<compile_context>
chip_gen: v7x
topology: tpu7x:2x2x1
jax: 0.10.0
libtpu: 0.0.40
codegen_flags: <defaults>
</compile_context>

<pallas_src>
import functools

import jax
import jax.numpy as jnp
from jax.experimental import pallas as pl
from jax.experimental.pallas import tpu as pltpu


def _triplet_loss_kernel(margin_ref, a_ref, p_ref, n_ref, psum_ref, *, batch, tile_b):
    # Load the (TB, D) tiles; upcast only if the inputs are not already f32
    # (e.g. bf16 embeddings -> accumulate squared distances in f32).
    a = a_ref[...]
    p = p_ref[...]
    n = n_ref[...]
    if a.dtype != jnp.float32:
        a = a.astype(jnp.float32)
        p = p.astype(jnp.float32)
        n = n.astype(jnp.float32)

    dpos = a - p
    dneg = a - n
    # One cross-lane (XLU) reduction per distance per tile: (TB, 1)
    dist_pos = jnp.sum(dpos * dpos, axis=1, keepdims=True)
    dist_neg = jnp.sum(dneg * dneg, axis=1, keepdims=True)

    margin = margin_ref[0, 0]
    losses = jnp.maximum(dist_pos - dist_neg + margin, 0.0)  # (TB, 1)

    # Mask remainder rows of the final tile so padded rows contribute 0.
    if batch % tile_b != 0:
        row = jax.lax.broadcasted_iota(jnp.int32, (tile_b, 1), 0) \
              + pl.program_id(0) * tile_b
        losses = jnp.where(row < batch, losses, 0.0)

    # Per-tile partial sum -> (1, 1) SMEM output block for this grid step.
    psum_ref[0, 0] = jnp.sum(losses)


def _choose_tile_b(B, D, itemsize):
    # Target ~1 MiB per input buffer (3 inputs x 2 buffers ~= 6 MiB total),
    # keep TB a multiple of 8, and never larger than (padded) B.
    target_rows = max(8, (1 << 20) // max(1, D * itemsize))
    tb = min(512, (target_rows // 8) * 8)
    tb = max(8, tb)
    padded_b = ((B + 7) // 8) * 8
    return min(tb, padded_b)


def triplet_loss(anchor, positive, negative, margin=1.0):
    assert anchor.shape == positive.shape == negative.shape
    assert anchor.ndim == 2
    B, D = anchor.shape
    tb = _choose_tile_b(B, D, anchor.dtype.itemsize)
    num_tiles = pl.cdiv(B, tb)

    margin_arr = jnp.full((1, 1), margin, dtype=jnp.float32)

    kernel = functools.partial(_triplet_loss_kernel, batch=B, tile_b=tb)

    emb_spec = pl.BlockSpec((tb, D), lambda i: (i, 0))

    partials = pl.pallas_call(
        kernel,
        grid=(num_tiles,),
        out_shape=jax.ShapeDtypeStruct((num_tiles, 1), jnp.float32),
        in_specs=[
            pl.BlockSpec((1, 1), lambda i: (0, 0),
                         memory_space=pltpu.MemorySpace.SMEM),
            emb_spec,
            emb_spec,
            emb_spec,
        ],
        out_specs=pl.BlockSpec((1, 1), lambda i: (i, 0),
                               memory_space=pltpu.MemorySpace.SMEM),
        compiler_params=pltpu.CompilerParams(
            dimension_semantics=("parallel",)),
    )(margin_arr, anchor, positive, negative)

    # Final mean over the batch in the wrapper (keeps the grid axis parallel).
    return jnp.sum(partials) / jnp.float32(B)


if __name__ == "__main__":
    B, D = 8, 32
    key = jax.random.PRNGKey(0)
    ka, kp, kn = jax.random.split(key, 3)
    anchor = jax.random.normal(ka, (B, D), dtype=jnp.float32)
    positive = jax.random.normal(kp, (B, D), dtype=jnp.float32)
    negative = jax.random.normal(kn, (B, D), dtype=jnp.float32)

    loss = triplet_loss(anchor, positive, negative, margin=1.0)
    jax.block_until_ready(loss)

    # Reference (matches the PyTorch module: squared L2, relu, mean).
    dp = jnp.sum((anchor - positive) ** 2, axis=1)
    dn = jnp.sum((anchor - negative) ** 2, axis=1)
    ref = jnp.mean(jnp.maximum(dp - dn + 1.0, 0.0))
    assert jnp.allclose(loss, ref, rtol=1e-5, atol=1e-5), (loss, ref)

    # Non-multiple-of-tile batch to exercise the remainder mask.
    B2 = 13
    k2a, k2p, k2n = jax.random.split(jax.random.PRNGKey(1), 3)
    a2 = jax.random.normal(k2a, (B2, D), dtype=jnp.float32)
    p2 = jax.random.normal(k2p, (B2, D), dtype=jnp.float32)
    n2 = jax.random.normal(k2n, (B2, D), dtype=jnp.float32)
    loss2 = triplet_loss(a2, p2, n2, margin=0.5)
    jax.block_until_ready(loss2)
    dp2 = jnp.sum((a2 - p2) ** 2, axis=1)
    dn2 = jnp.sum((a2 - n2) ** 2, axis=1)
    ref2 = jnp.mean(jnp.maximum(dp2 - dn2 + 0.5, 0.0))
    assert jnp.allclose(loss2, ref2, rtol=1e-5, atol=1e-5), (loss2, ref2)

    print("KERNEL_OK")
</pallas_src>

<mosaic_0001>
module attributes {stable_mosaic.version = 11 : i64} {
  func.func @_triplet_loss_kernel(%arg0: i32, %arg1: memref<1x1xf32, #tpu.memory_space<smem>>, %arg2: memref<8x32xf32, #tpu.memory_space<vmem>>, %arg3: memref<8x32xf32, #tpu.memory_space<vmem>>, %arg4: memref<8x32xf32, #tpu.memory_space<vmem>>, %arg5: memref<1x1xf32, #tpu.memory_space<smem>>) attributes {dimension_semantics = [#tpu.dimension_semantics<parallel>], iteration_bounds = array<i64: 1>, scalar_prefetch = 0 : i64, scratch_operands = 0 : i64, tpu.core_type = #tpu.core_type<tc>, window_params = [{transform_indices = @transform_0, window_bounds = array<i64: 1, 1>}, {transform_indices = @transform_1, window_bounds = array<i64: 8, 32>}, {transform_indices = @transform_2, window_bounds = array<i64: 8, 32>}, {transform_indices = @transform_3, window_bounds = array<i64: 8, 32>}, {transform_indices = @transform_4, window_bounds = array<i64: 1, 1>}]} {
    %c0 = arith.constant 0 : index
    %c0_0 = arith.constant 0 : index
    %0 = vector.load %arg2[%c0, %c0_0] : memref<8x32xf32, #tpu.memory_space<vmem>>, vector<8x32xf32>
    %c0_1 = arith.constant 0 : index
    %c0_2 = arith.constant 0 : index
    %1 = vector.load %arg3[%c0_1, %c0_2] : memref<8x32xf32, #tpu.memory_space<vmem>>, vector<8x32xf32>
    %c0_3 = arith.constant 0 : index
    %c0_4 = arith.constant 0 : index
    %2 = vector.load %arg4[%c0_3, %c0_4] : memref<8x32xf32, #tpu.memory_space<vmem>>, vector<8x32xf32>
    %3 = arith.subf %0, %1 : vector<8x32xf32>
    %4 = arith.subf %0, %2 : vector<8x32xf32>
    %5 = arith.mulf %3, %3 : vector<8x32xf32>
    %cst = arith.constant dense<0.000000e+00> : vector<8xf32>
    %6 = vector.multi_reduction <add>, %5, %cst [1] : vector<8x32xf32> to vector<8xf32>
    %7 = vector.shape_cast %6 : vector<8xf32> to vector<8x1xf32>
    %8 = arith.mulf %4, %4 : vector<8x32xf32>
    %cst_5 = arith.constant dense<0.000000e+00> : vector<8xf32>
    %9 = vector.multi_reduction <add>, %8, %cst_5 [1] : vector<8x32xf32> to vector<8xf32>
    %10 = vector.shape_cast %9 : vector<8xf32> to vector<8x1xf32>
    %c0_6 = arith.constant 0 : index
    %c0_7 = arith.constant 0 : index
    %11 = memref.load %arg1[%c0_6, %c0_7] : memref<1x1xf32, #tpu.memory_space<smem>>
    %12 = arith.subf %7, %10 : vector<8x1xf32>
    %13 = vector.broadcast %11 : f32 to vector<8x1xf32>
    %14 = arith.addf %12, %13 : vector<8x1xf32>
    %cst_8 = arith.constant 0.000000e+00 : f32
    %15 = vector.broadcast %cst_8 : f32 to vector<8x1xf32>
    %16 = arith.maximumf %14, %15 : vector<8x1xf32>
    %17 = vector.shape_cast %16 : vector<8x1xf32> to vector<1x8x1xf32>
    %cst_9 = arith.constant dense<0.000000e+00> : vector<1xf32>
    %18 = vector.multi_reduction <add>, %17, %cst_9 [1, 2] : vector<1x8x1xf32> to vector<1xf32>
    %19 = vector.shape_cast %18 : vector<1xf32> to vector<1x1x1xf32>
    %20 = vector.extract %19[0, 0, 0] : f32 from vector<1x1x1xf32>
    %c0_10 = arith.constant 0 : index
    %c0_11 = arith.constant 0 : index
    %21 = memref.load %arg5[%c0_10, %c0_11] : memref<1x1xf32, #tpu.memory_space<smem>>
    memref.store %20, %arg5[%c0_10, %c0_11] : memref<1x1xf32, #tpu.memory_space<smem>>
    return
  }
  func.func @transform_0(%arg0: i32) -> (i32, i32) {
    %c0_i32 = arith.constant 0 : i32
    %c0_i32_0 = arith.constant 0 : i32
    %c0_i32_1 = arith.constant 0 : i32
    return %c0_i32, %c0_i32_0 : i32, i32
  }
  func.func @transform_1(%arg0: i32) -> (i32, i32) {
    %c0_i32 = arith.constant 0 : i32
    %c0_i32_0 = arith.constant 0 : i32
    return %arg0, %c0_i32 : i32, i32
  }
  func.func @transform_2(%arg0: i32) -> (i32, i32) {
    %c0_i32 = arith.constant 0 : i32
    %c0_i32_0 = arith.constant 0 : i32
    return %arg0, %c0_i32 : i32, i32
  }
  func.func @transform_3(%arg0: i32) -> (i32, i32) {
    %c0_i32 = arith.constant 0 : i32
    %c0_i32_0 = arith.constant 0 : i32
    return %arg0, %c0_i32 : i32, i32
  }
  func.func @transform_4(%arg0: i32) -> (i32, i32) {
    %c0_i32 = arith.constant 0 : i32
    %c0_i32_0 = arith.constant 0 : i32
    return %arg0, %c0_i32 : i32, i32
  }
}

</mosaic_0001>

<llo_original>
// kernel: tpu_custom_call.1
$region0: #{tpu_custom_call.1}
  #allocation0 [shape = 'u32[]', space=smem, size = 0x4, offset = 0x4, fixed_abs, tag = 'smem constant byte address 0x4 - core index']
  #allocation1 [shape = 'u32[144,128]{1,0:T(1,128)}', space=vmem, size = 0x12000, scoped, tag = 'internal scratch']
  #allocation2 [shape = 'f32[1,1]{1,0:T(1,128)S(6)}', space=smem, size = 0x200, scoped, tag = 'scoped memory for tpu_custom_call.1']
  %s0 = inlined_call_operand.<no memory space> [shape: f32[1,1], index: 0, kind: input, shape index: {}]
  %s1 = inlined_call_operand.hbm [shape: f32[8,32], index: 1, kind: input, shape index: {}]
  %s2 = inlined_call_operand.hbm [shape: f32[8,32], index: 2, kind: input, shape index: {}]
  %s3 = inlined_call_operand.vmem [shape: f32[8,32], index: 3, kind: input, shape index: {}]
  %s4 = inlined_call_operand.hbm [shape: f32[1,1], index: 4, kind: output, shape index: {}]
  %s5 = sld [smem:[#allocation0]]
  $region34: #{tpu_custom_call.1} parent=0
    _
  %s7 = ssub.s32 1, %s5
  %s8 = scalar_select 0, %s7, %s5
  %9 = sst [smem:[#allocation2]] %s0
  $region1: #{tpu_custom_call.1} parent=0
    #allocation3 [shape = 'u8[4096]{0}', space=vmem, size = 0x1000, scoped, tag = 'input window, operand 1, single buffered']
    #allocation4 [shape = 's32[1]{0}', space=sflag, size = 0x4, scoped, tag = 'scoped memory for tpu_custom_call.1']
    #allocation5 [shape = 's32[1]{0}', space=sflag, size = 0x4, scoped, tag = 'scoped memory for tpu_custom_call.1']
    #allocation6 [shape = 'u8[4096]{0}', space=vmem, size = 0x1000, scoped, tag = 'input window, operand 2, single buffered']
    #allocation7 [shape = 's32[1]{0}', space=sflag, size = 0x4, scoped, tag = 'scoped memory for tpu_custom_call.1']
    #allocation8 [shape = 'u8[512]{0}', space=smem, size = 0x200, scoped, tag = 'output window, operand 0, single buffered']
    %10 = vsyncpa [#allocation4], 0
    %11 = vsyncpa [#allocation7], 0
    %12 = vsyncpa [#allocation5], 0
    // Predicated region
    $region2: #{tpu_custom_call.1} parent=1 // pred_check
      _
    $region3: #{tpu_custom_call.1} parent=1 // pred_check_branch
      %14 = sbr.rel (0) target = $region5
    $region4: #{tpu_custom_call.1} parent=1 // pred_region
      _
    $region5: #{tpu_custom_call.1} parent=1 // pred_fallthru
      _
    // Predicated region
    $region6: #{tpu_custom_call.1} parent=1 // pred_check
      _
    $region7: #{tpu_custom_call.1} parent=1 // pred_check_branch
      %16 = sbr.rel (0) target = $region9
    $region8: #{tpu_custom_call.1} parent=1 // pred_region
      %s18 = ssub.s32 128, 128
      %19 = vsyncadd [#allocation4], %s18
      %s21 = sshll.u32 [#allocation3], 4
      %s22 = int_to_ptr.vmem [resolvable:$true] %s21
      %24 = dma.hbm_to_vmem [thread:$0]  %s1, 128, %s22, [#allocation4]
    $region9: #{tpu_custom_call.1} parent=1 // pred_fallthru
      _
    // Predicated region
    $region10: #{tpu_custom_call.1} parent=1 // pred_check
      _
    $region11: #{tpu_custom_call.1} parent=1 // pred_check_branch
      %26 = sbr.rel (0) target = $region13
    $region12: #{tpu_custom_call.1} parent=1 // pred_region
      %s28 = ssub.s32 128, 128
      %29 = vsyncadd [#allocation7], %s28
      %s31 = sshll.u32 [#allocation6], 4
      %s32 = int_to_ptr.vmem [resolvable:$true] %s31
      %34 = dma.hbm_to_vmem [thread:$0]  %s2, 128, %s32, [#allocation7]
    $region13: #{tpu_custom_call.1} parent=1 // pred_fallthru
      _
    // Predicated region
    $region14: #{tpu_custom_call.1} parent=1 // pred_check
      _
    $region15: #{tpu_custom_call.1} parent=1 // pred_check_branch
      %36 = sbr.rel (0) target = $region17
    $region16: #{tpu_custom_call.1} parent=1 // pred_region
      _
    $region17: #{tpu_custom_call.1} parent=1 // pred_fallthru
      _
    // Predicated region
    $region18: #{tpu_custom_call.1} parent=1 // pred_check
      _
    $region19: #{tpu_custom_call.1} parent=1 // pred_check_branch
      %38 = sbr.rel (0) target = $region21
    $region20: #{tpu_custom_call.1} parent=1 // pred_region
      %39 = dma.done [#allocation4], 128
    $region21: #{tpu_custom_call.1} parent=1 // pred_fallthru
      _
    // Predicated region
    $region22: #{tpu_custom_call.1} parent=1 // pred_check
      _
    $region23: #{tpu_custom_call.1} parent=1 // pred_check_branch
      %41 = sbr.rel (0) target = $region25
    $region24: #{tpu_custom_call.1} parent=1 // pred_region
      %42 = dma.done [#allocation7], 128
    $region25: #{tpu_custom_call.1} parent=1 // pred_fallthru
      _
    %v43 = vld [vmem:[#allocation3] sm:$0xff]
    %v44 = vld [vmem:[#allocation6] sm:$0xff]
    %v45 = vld [vmem:[%s3] sm:$0xff]
    %v46 = vsub.f32 %v43, %v44
    %v47 = vsub.f32 %v43, %v45
    %v48 = vmul.f32 %v46, %v46
    %vm49 = vcmask 261120
    %v50 = vsel %vm49, %v48, 0.0
    %51 = vadd.xlane.f32.xlu0 %v50
    %v52 = vpop.xlane.xlu0 %51
    %v53 = vmul.f32 %v47, %v47
    %v54 = vsel %vm49, %v53, 0.0
    %55 = vadd.xlane.f32.xlu0 %v54
    %v56 = vpop.xlane.xlu0 %55
    %s57 = sld [smem:[#allocation2]]
    %v58 = vsub.f32 %v52, %v56
    %v59 = vstv %s57
    %v60 = vadd.f32 %v58, %v59
    %v61 = vmax.f32 %v60, 0.0
    %vm62 = vcmask 7168
    %v63 = vsel %vm62, %v61, 0.0
    %64 = vadd.xlane.f32.xlu0 %v63
    %v65 = vpop.xlane.xlu0 %64
    %v66 = vrot.slane %v65, 4
    %v67 = vadd.f32 %v65, %v66
    %v68 = vrot.slane %v67, 2
    %v69 = vadd.f32 %v67, %v68
    %v70 = vrot.slane %v69, 1
    %v71 = vadd.f32 %v69, %v70
    %s72 = vtos %v71
    %s73 = scalar_lea.smem [#allocation8], 0
    %74 = sst [smem:[%s73]] %s72
    // Predicated region
    $region26: #{tpu_custom_call.1} parent=1 // pred_check
      _
    $region27: #{tpu_custom_call.1} parent=1 // pred_check_branch
      %76 = sbr.rel (0) target = $region29
    $region28: #{tpu_custom_call.1} parent=1 // pred_region
      %s78 = ssub.s32 16, 16
      %79 = vsyncadd [#allocation5], %s78
      %82 = dma.smem_to_hbm [#allocation8], 16, %s4, [#allocation5]
    $region29: #{tpu_custom_call.1} parent=1 // pred_fallthru
      _
    // Predicated region
    $region30: #{tpu_custom_call.1} parent=1 // pred_check
      _
    $region31: #{tpu_custom_call.1} parent=1 // pred_check_branch
      %84 = sbr.rel (0) target = $region33
    $region32: #{tpu_custom_call.1} parent=1 // pred_region
      %85 = dma.done [#allocation5], 16
    $region33: #{tpu_custom_call.1} parent=1 // pred_fallthru
      _
    %86 = sfence
    %87 = vsyncpa [#allocation4], 1
    %88 = vsyncpa [#allocation7], 1
    %89 = vsyncpa [#allocation5], 1

</llo_original>
